<compile_context>
chip_gen: v6e
topology: v6e:2x2x1
jax: 0.10.0
libtpu: 0.0.40
codegen_flags: <defaults>
</compile_context>

<pallas_src>
import functools

import jax
import jax.numpy as jnp
from jax.experimental import pallas as pl
from jax.experimental.pallas import tpu as pltpu


def _round_up(a, b):
    return (a + b - 1) // b * b


def _fixed_quantize(v, i_bits, f_bits):
    """HGQ-style fixed-point quantizer: k=1 (signed), RND rounding, SAT overflow."""
    scale = 2.0 ** f_bits
    qmax = 2.0 ** i_bits - 2.0 ** (-f_bits)
    qmin = -(2.0 ** i_bits)
    v = jnp.floor(v * scale + 0.5) / scale      # RND (round half up)
    return jnp.clip(v, qmin, qmax)              # SAT


def _conv1d_kernel(xm_ref, xh_ref, w_ref, b_ref, o_ref, *, k_size, tl, b_tile):
    # Block shapes per grid step (b = batch-tile index, t = L_out tile index):
    #   xm_ref: (B_TILE, C_in, TL)    input window aligned with the output tile
    #   xh_ref: (B_TILE, C_in, 128)   halo: next 128 input columns (for K-1 taps)
    #   w_ref:  (K, C_out, C_in)      pre-pruned + pre-quantized weight (resident)
    #   b_ref:  (C_out, 1)            pre-quantized bias (f32)
    #   o_ref:  (B_TILE, C_out, TL)   lane-dense output tile (TL multiple of 128)
    bvec = b_ref[...]
    for b0 in range(b_tile):
        xs = jnp.concatenate([xm_ref[b0], xh_ref[b0]], axis=-1)   # (C_in, TL+128)
        xs = xs.astype(w_ref.dtype)
        # K accumulated MXU dots on lane-shifted views (no im2col slab / relayout).
        acc = jnp.dot(w_ref[0], xs[:, :tl], preferred_element_type=jnp.float32)
        for k in range(1, k_size):
            acc += jnp.dot(w_ref[k], xs[:, k:k + tl],
                           preferred_element_type=jnp.float32)
        o_ref[b0] = (acc + bvec).astype(o_ref.dtype)


def compressed_conv1d(x, weight, mask, bias, *, padding=0, i_bits=3.0, f_bits=4.0,
                      mxu_dtype=jnp.bfloat16):
    """x: (N, C_in, L) f32; weight/mask: (C_out, C_in, K); bias: (C_out,)."""
    n, c_in, l = x.shape
    c_out, _, k_size = weight.shape
    assert k_size <= 128, "conv window must fit inside one 128-lane halo block"
    l_out = l + 2 * padding - k_size + 1          # stride=1, dilation=1
    assert l_out > 0

    # --- prune -> quantize ONCE in plain JAX (pruning_first=True) --------------
    w_q = _fixed_quantize(weight * mask, i_bits, f_bits)
    b_q = _fixed_quantize(bias, i_bits, f_bits)
    # (K, C_out, C_in) per-tap weight slabs, resident in VMEM via a constant index
    # map.  The bf16 cast is exact for the default 3.4 fixed-point grid.
    w_k = jnp.transpose(w_q, (2, 0, 1)).astype(mxu_dtype)
    b2d = b_q.reshape(c_out, 1).astype(jnp.float32)

    # --- batch tile: amortize per-step overhead when C_out is small ------------
    b_tile = max(1, min(8, 256 // max(c_out, 1), n))
    while n % b_tile:
        b_tile -= 1

    # --- lane-dense L_out tiling: TL multiple of 128, cap 1024 -----------------
    tl = min(1024, _round_up(l_out, 128))
    num_l_tiles = pl.cdiv(l_out, tl)
    l_out_pad = num_l_tiles * tl
    halo = 128
    blocks_per_tile = tl // halo   # halo block index units are 128 elements

    # One zero-pad over the length axis: conv padding on the left, tile/halo
    # alignment on the right.  Extra output columns are sliced off at the end.
    right = l_out_pad + halo - l - padding
    assert right >= 0
    x_pad = jnp.pad(x, ((0, 0), (0, 0), (padding, right)))

    kernel = functools.partial(_conv1d_kernel, k_size=k_size, tl=tl, b_tile=b_tile)

    # Advisory cost estimate so XLA schedules the surrounding ops sensibly.
    bytes_accessed = (x_pad.size * x_pad.dtype.itemsize
                      + w_k.size * w_k.dtype.itemsize
                      + b2d.size * b2d.dtype.itemsize
                      + n * c_out * l_out_pad * x.dtype.itemsize)
    cost = pl.CostEstimate(flops=2 * n * l_out * c_out * k_size * c_in,
                           transcendentals=0, bytes_accessed=int(bytes_accessed))

    # VMEM working set: double-buffered input/halo/output tiles + resident weight.
    # Only raise the scoped limit when the conservative default would be tight.
    step_bytes = (2 * 4 * b_tile * c_in * (tl + halo)
                  + 2 * 4 * b_tile * c_out * tl
                  + 2 * w_k.size * w_k.dtype.itemsize
                  + 4 * c_out)
    cp_kwargs = dict(dimension_semantics=("parallel", "parallel"))
    if step_bytes > 8 * 1024 * 1024:
        cp_kwargs["vmem_limit_bytes"] = int(min(4 * step_bytes, 64 * 1024 * 1024))

    out = pl.pallas_call(
        kernel,
        out_shape=jax.ShapeDtypeStruct((n, c_out, l_out_pad), x.dtype),
        grid=(n // b_tile, num_l_tiles),
        in_specs=[
            # main input window of the current output tile
            pl.BlockSpec((b_tile, c_in, tl), lambda b, t: (b, 0, t)),
            # 128-wide halo immediately after the current tile (same array)
            pl.BlockSpec((b_tile, c_in, halo),
                         lambda b, t: (b, 0, (t + 1) * blocks_per_tile)),
            # pre-quantized weight / bias, resident (constant index maps)
            pl.BlockSpec((k_size, c_out, c_in), lambda b, t: (0, 0, 0)),
            pl.BlockSpec((c_out, 1), lambda b, t: (0, 0)),
        ],
        out_specs=pl.BlockSpec((b_tile, c_out, tl), lambda b, t: (b, 0, t)),
        compiler_params=pltpu.CompilerParams(**cp_kwargs),
        cost_estimate=cost,
    )(x_pad, x_pad, w_k, b2d)
    return out[:, :, :l_out]


def _reference(x, weight, mask, bias, *, padding, i_bits, f_bits):
    """Plain-JAX reference of the same forward (prune -> quantize -> conv1d)."""
    w = _fixed_quantize(weight * mask, i_bits, f_bits)
    b = _fixed_quantize(bias, i_bits, f_bits)
    out = jax.lax.conv_general_dilated(
        x, w, window_strides=(1,), padding=[(padding, padding)],
        dimension_numbers=("NCH", "OIH", "NCH"),
    )
    return out + b[None, :, None]


if __name__ == "__main__":
    # Small shapes consistent with the module: conv1d over (N, C_in, L)
    N, C_IN, L = 2, 4, 16
    C_OUT, K = 8, 3
    PADDING = 1
    I_BITS, F_BITS = 3.0, 4.0  # default_integer_bits / default_fractional_bits

    key = jax.random.PRNGKey(0)
    kx, kw, kb, km = jax.random.split(key, 4)
    x = jax.random.normal(kx, (N, C_IN, L), dtype=jnp.float32)
    weight = jax.random.normal(kw, (C_OUT, C_IN, K), dtype=jnp.float32) * 0.5
    bias = jax.random.normal(kb, (C_OUT,), dtype=jnp.float32) * 0.1
    # Deterministic binary pruning mask (stands in for the pruning layer output).
    mask = (jax.random.uniform(km, (C_OUT, C_IN, K)) > 0.3).astype(jnp.float32)

    # --- exact f32 MXU path: matches the plain-JAX reference tightly -----------
    out_f32 = compressed_conv1d(x, weight, mask, bias, padding=PADDING,
                                i_bits=I_BITS, f_bits=F_BITS,
                                mxu_dtype=jnp.float32)
    out_f32 = jax.block_until_ready(out_f32)
    ref = _reference(x, weight, mask, bias, padding=PADDING,
                     i_bits=I_BITS, f_bits=F_BITS)
    assert out_f32.shape == (N, C_OUT, L)  # stride=1, padding=1, K=3 -> L_out = L
    assert jnp.allclose(out_f32, ref, atol=1e-5, rtol=1e-5)

    # --- default bf16 MXU path: weight cast exact, activations bf16-rounded ----
    out_bf16 = compressed_conv1d(x, weight, mask, bias, padding=PADDING,
                                 i_bits=I_BITS, f_bits=F_BITS)
    out_bf16 = jax.block_until_ready(out_bf16)
    ref_bf16 = _reference(x.astype(jnp.bfloat16).astype(jnp.float32),
                          weight, mask, bias, padding=PADDING,
                          i_bits=I_BITS, f_bits=F_BITS)
    assert jnp.allclose(out_bf16, ref_bf16, atol=1e-4, rtol=1e-4)

    print("KERNEL_OK")
</pallas_src>

<mosaic_0001>
module attributes {stable_mosaic.version = 11 : i64} {
  func.func @_conv1d_kernel(%arg0: i32, %arg1: i32, %arg2: memref<2x4x128xf32, #tpu.memory_space<vmem>>, %arg3: memref<2x4x128xf32, #tpu.memory_space<vmem>>, %arg4: memref<3x8x4xf32, #tpu.memory_space<vmem>>, %arg5: memref<8x1xf32, #tpu.memory_space<vmem>>, %arg6: memref<2x8x128xf32, #tpu.memory_space<vmem>>) attributes {dimension_semantics = [#tpu.dimension_semantics<parallel>, #tpu.dimension_semantics<parallel>], iteration_bounds = array<i64: 1, 1>, scalar_prefetch = 0 : i64, scratch_operands = 0 : i64, tpu.core_type = #tpu.core_type<tc>, window_params = [{transform_indices = @transform_0, window_bounds = array<i64: 2, 4, 128>}, {transform_indices = @transform_1, window_bounds = array<i64: 2, 4, 128>}, {pipeline_mode = #tpu.pipeline_mode<synchronous>, transform_indices = @transform_2, window_bounds = array<i64: 3, 8, 4>}, {pipeline_mode = #tpu.pipeline_mode<synchronous>, transform_indices = @transform_3, window_bounds = array<i64: 8, 1>}, {transform_indices = @transform_4, window_bounds = array<i64: 2, 8, 128>}]} {
    %c0 = arith.constant 0 : index
    %c0_0 = arith.constant 0 : index
    %0 = vector.load %arg5[%c0, %c0_0] : memref<8x1xf32, #tpu.memory_space<vmem>>, vector<8x1xf32>
    %c0_1 = arith.constant 0 : index
    %c0_2 = arith.constant 0 : index
    %c0_3 = arith.constant 0 : index
    %1 = vector.load %arg2[%c0_1, %c0_2, %c0_3] : memref<2x4x128xf32, #tpu.memory_space<vmem>>, vector<1x4x128xf32>
    %2 = vector.shape_cast %1 : vector<1x4x128xf32> to vector<4x128xf32>
    %c0_4 = arith.constant 0 : index
    %c0_5 = arith.constant 0 : index
    %c0_6 = arith.constant 0 : index
    %3 = vector.load %arg3[%c0_4, %c0_5, %c0_6] : memref<2x4x128xf32, #tpu.memory_space<vmem>>, vector<1x4x128xf32>
    %4 = vector.shape_cast %3 : vector<1x4x128xf32> to vector<4x128xf32>
    %5 = tpu.concatenate %2, %4 in 1 : vector<4x128xf32>, vector<4x128xf32> -> vector<4x256xf32>
    %c0_7 = arith.constant 0 : index
    %c0_8 = arith.constant 0 : index
    %c0_9 = arith.constant 0 : index
    %6 = vector.load %arg4[%c0_7, %c0_8, %c0_9] : memref<3x8x4xf32, #tpu.memory_space<vmem>>, vector<1x8x4xf32>
    %7 = vector.shape_cast %6 : vector<1x8x4xf32> to vector<8x4xf32>
    %8 = vector.extract_strided_slice %5 {offsets = [0, 0], sizes = [4, 128], strides = [1, 1]} : vector<4x256xf32> to vector<4x128xf32>
    %cst = arith.constant dense<0.000000e+00> : vector<8x128xf32>
    %9 = tpu.matmul %7, %8, %cst {dimension_numbers = #tpu.dot_dimension_numbers<[1], [0], [0], [1], [0, 0, 1, 1], [], []>} : vector<8x4xf32>, vector<4x128xf32>, vector<8x128xf32> -> vector<8x128xf32>
    %c1 = arith.constant 1 : index
    %c0_10 = arith.constant 0 : index
    %c0_11 = arith.constant 0 : index
    %10 = vector.load %arg4[%c1, %c0_10, %c0_11] : memref<3x8x4xf32, #tpu.memory_space<vmem>>, vector<1x8x4xf32>
    %11 = vector.shape_cast %10 : vector<1x8x4xf32> to vector<8x4xf32>
    %12 = vector.extract_strided_slice %5 {offsets = [0, 1], sizes = [4, 128], strides = [1, 1]} : vector<4x256xf32> to vector<4x128xf32>
    %cst_12 = arith.constant dense<0.000000e+00> : vector<8x128xf32>
    %13 = tpu.matmul %11, %12, %cst_12 {dimension_numbers = #tpu.dot_dimension_numbers<[1], [0], [0], [1], [0, 0, 1, 1], [], []>} : vector<8x4xf32>, vector<4x128xf32>, vector<8x128xf32> -> vector<8x128xf32>
    %14 = arith.addf %9, %13 : vector<8x128xf32>
    %c2 = arith.constant 2 : index
    %c0_13 = arith.constant 0 : index
    %c0_14 = arith.constant 0 : index
    %15 = vector.load %arg4[%c2, %c0_13, %c0_14] : memref<3x8x4xf32, #tpu.memory_space<vmem>>, vector<1x8x4xf32>
    %16 = vector.shape_cast %15 : vector<1x8x4xf32> to vector<8x4xf32>
    %17 = vector.extract_strided_slice %5 {offsets = [0, 2], sizes = [4, 128], strides = [1, 1]} : vector<4x256xf32> to vector<4x128xf32>
    %cst_15 = arith.constant dense<0.000000e+00> : vector<8x128xf32>
    %18 = tpu.matmul %16, %17, %cst_15 {dimension_numbers = #tpu.dot_dimension_numbers<[1], [0], [0], [1], [0, 0, 1, 1], [], []>} : vector<8x4xf32>, vector<4x128xf32>, vector<8x128xf32> -> vector<8x128xf32>
    %19 = arith.addf %14, %18 : vector<8x128xf32>
    %20 = vector.broadcast %0 : vector<8x1xf32> to vector<8x128xf32>
    %21 = arith.addf %19, %20 : vector<8x128xf32>
    %c0_16 = arith.constant 0 : index
    %c0_17 = arith.constant 0 : index
    %c0_18 = arith.constant 0 : index
    %22 = vector.load %arg6[%c0_16, %c0_17, %c0_18] : memref<2x8x128xf32, #tpu.memory_space<vmem>>, vector<1x8x128xf32>
    %23 = vector.shape_cast %22 : vector<1x8x128xf32> to vector<8x128xf32>
    %24 = vector.shape_cast %21 : vector<8x128xf32> to vector<1x8x128xf32>
    tpu.vector_store %arg6[%c0_16, %c0_17, %c0_18], %24 {strides = array<i32>} : memref<2x8x128xf32, #tpu.memory_space<vmem>>, vector<1x8x128xf32>,
    %c1_19 = arith.constant 1 : index
    %c0_20 = arith.constant 0 : index
    %c0_21 = arith.constant 0 : index
    %25 = vector.load %arg2[%c1_19, %c0_20, %c0_21] : memref<2x4x128xf32, #tpu.memory_space<vmem>>, vector<1x4x128xf32>
    %26 = vector.shape_cast %25 : vector<1x4x128xf32> to vector<4x128xf32>
    %c1_22 = arith.constant 1 : index
    %c0_23 = arith.constant 0 : index
    %c0_24 = arith.constant 0 : index
    %27 = vector.load %arg3[%c1_22, %c0_23, %c0_24] : memref<2x4x128xf32, #tpu.memory_space<vmem>>, vector<1x4x128xf32>
    %28 = vector.shape_cast %27 : vector<1x4x128xf32> to vector<4x128xf32>
    %29 = tpu.concatenate %26, %28 in 1 : vector<4x128xf32>, vector<4x128xf32> -> vector<4x256xf32>
    %c0_25 = arith.constant 0 : index
    %c0_26 = arith.constant 0 : index
    %c0_27 = arith.constant 0 : index
    %30 = vector.load %arg4[%c0_25, %c0_26, %c0_27] : memref<3x8x4xf32, #tpu.memory_space<vmem>>, vector<1x8x4xf32>
    %31 = vector.shape_cast %30 : vector<1x8x4xf32> to vector<8x4xf32>
    %32 = vector.extract_strided_slice %29 {offsets = [0, 0], sizes = [4, 128], strides = [1, 1]} : vector<4x256xf32> to vector<4x128xf32>
    %cst_28 = arith.constant dense<0.000000e+00> : vector<8x128xf32>
    %33 = tpu.matmul %31, %32, %cst_28 {dimension_numbers = #tpu.dot_dimension_numbers<[1], [0], [0], [1], [0, 0, 1, 1], [], []>} : vector<8x4xf32>, vector<4x128xf32>, vector<8x128xf32> -> vector<8x128xf32>
    %c1_29 = arith.constant 1 : index
    %c0_30 = arith.constant 0 : index
    %c0_31 = arith.constant 0 : index
    %34 = vector.load %arg4[%c1_29, %c0_30, %c0_31] : memref<3x8x4xf32, #tpu.memory_space<vmem>>, vector<1x8x4xf32>
    %35 = vector.shape_cast %34 : vector<1x8x4xf32> to vector<8x4xf32>
    %36 = vector.extract_strided_slice %29 {offsets = [0, 1], sizes = [4, 128], strides = [1, 1]} : vector<4x256xf32> to vector<4x128xf32>
    %cst_32 = arith.constant dense<0.000000e+00> : vector<8x128xf32>
    %37 = tpu.matmul %35, %36, %cst_32 {dimension_numbers = #tpu.dot_dimension_numbers<[1], [0], [0], [1], [0, 0, 1, 1], [], []>} : vector<8x4xf32>, vector<4x128xf32>, vector<8x128xf32> -> vector<8x128xf32>
    %38 = arith.addf %33, %37 : vector<8x128xf32>
    %c2_33 = arith.constant 2 : index
    %c0_34 = arith.constant 0 : index
    %c0_35 = arith.constant 0 : index
    %39 = vector.load %arg4[%c2_33, %c0_34, %c0_35] : memref<3x8x4xf32, #tpu.memory_space<vmem>>, vector<1x8x4xf32>
    %40 = vector.shape_cast %39 : vector<1x8x4xf32> to vector<8x4xf32>
    %41 = vector.extract_strided_slice %29 {offsets = [0, 2], sizes = [4, 128], strides = [1, 1]} : vector<4x256xf32> to vector<4x128xf32>
    %cst_36 = arith.constant dense<0.000000e+00> : vector<8x128xf32>
    %42 = tpu.matmul %40, %41, %cst_36 {dimension_numbers = #tpu.dot_dimension_numbers<[1], [0], [0], [1], [0, 0, 1, 1], [], []>} : vector<8x4xf32>, vector<4x128xf32>, vector<8x128xf32> -> vector<8x128xf32>
    %43 = arith.addf %38, %42 : vector<8x128xf32>
    %44 = vector.broadcast %0 : vector<8x1xf32> to vector<8x128xf32>
    %45 = arith.addf %43, %44 : vector<8x128xf32>
    %c1_37 = arith.constant 1 : index
    %c0_38 = arith.constant 0 : index
    %c0_39 = arith.constant 0 : index
    %46 = vector.load %arg6[%c1_37, %c0_38, %c0_39] : memref<2x8x128xf32, #tpu.memory_space<vmem>>, vector<1x8x128xf32>
    %47 = vector.shape_cast %46 : vector<1x8x128xf32> to vector<8x128xf32>
    %48 = vector.shape_cast %45 : vector<8x128xf32> to vector<1x8x128xf32>
    tpu.vector_store %arg6[%c1_37, %c0_38, %c0_39], %48 {strides = array<i32>} : memref<2x8x128xf32, #tpu.memory_space<vmem>>, vector<1x8x128xf32>,
    return
  }
  func.func @transform_0(%arg0: i32, %arg1: i32) -> (i32, i32, i32) {
    %c0_i32 = arith.constant 0 : i32
    %c0_i32_0 = arith.constant 0 : i32
    return %arg0, %c0_i32, %arg1 : i32, i32, i32
  }
  func.func @transform_1(%arg0: i32, %arg1: i32) -> (i32, i32, i32) {
    %c1_i32 = arith.constant 1 : i32
    %0 = arith.addi %arg1, %c1_i32 : i32
    %c1_i32_0 = arith.constant 1 : i32
    %1 = arith.muli %0, %c1_i32_0 : i32
    %c0_i32 = arith.constant 0 : i32
    %c0_i32_1 = arith.constant 0 : i32
    return %arg0, %c0_i32, %1 : i32, i32, i32
  }
  func.func @transform_2(%arg0: i32, %arg1: i32) -> (i32, i32, i32) {
    %c0_i32 = arith.constant 0 : i32
    %c0_i32_0 = arith.constant 0 : i32
    %c0_i32_1 = arith.constant 0 : i32
    %c0_i32_2 = arith.constant 0 : i32
    return %c0_i32, %c0_i32_0, %c0_i32_1 : i32, i32, i32
  }
  func.func @transform_3(%arg0: i32, %arg1: i32) -> (i32, i32) {
    %c0_i32 = arith.constant 0 : i32
    %c0_i32_0 = arith.constant 0 : i32
    %c0_i32_1 = arith.constant 0 : i32
    return %c0_i32, %c0_i32_0 : i32, i32
  }
  func.func @transform_4(%arg0: i32, %arg1: i32) -> (i32, i32, i32) {
    %c0_i32 = arith.constant 0 : i32
    %c0_i32_0 = arith.constant 0 : i32
    return %arg0, %c0_i32, %arg1 : i32, i32, i32
  }
}

</mosaic_0001>

<llo_original>
// kernel: tpu_custom_call.1
$region0: #{tpu_custom_call.1}
  #allocation0 [shape = 'u32[]', space=smem, size = 0x4, offset = 0x4, fixed_abs, tag = 'smem constant byte address 0x4 - core index']
  #allocation1 [shape = 'u32[144,128]{1,0:T(1,128)}', space=vmem, size = 0x12000, scoped, tag = 'internal scratch']
  %s0 = inlined_call_operand.vmem [shape: f32[2,4,256], index: 0, kind: input, shape index: {}]
  %s1 = inlined_call_operand.vmem [shape: f32[2,4,256], index: 1, kind: input, shape index: {}]
  %s2 = inlined_call_operand.vmem [shape: f32[3,8,4], index: 2, kind: input, shape index: {}]
  %s3 = inlined_call_operand.vmem [shape: f32[8,1], index: 3, kind: input, shape index: {}]
  %s4 = inlined_call_operand.hbm [shape: f32[2,8,128], index: 4, kind: output, shape index: {}]
  %s5 = sld [smem:[#allocation0]]
  $region108: #{tpu_custom_call.1} parent=0
    _
  %s7 = ssub.s32 1, %s5
  %s8 = scalar_select 0, %s7, %s5
  $region1: #{tpu_custom_call.1} parent=0
    #allocation2 [shape = 'u8[4096]{0}', space=vmem, size = 0x1000, scoped, tag = 'input window, operand 0, single buffered']
    #allocation3 [shape = 'u8[4096]{0}', space=vmem, size = 0x1000, scoped, tag = 'input window, operand 1, single buffered']
    #allocation4 [shape = 'u8[8192]{0}', space=vmem, size = 0x2000, scoped, tag = 'output window, operand 0, single buffered']
    #allocation5 [shape = 's32[1]{0}', space=sflag, size = 0x4, scoped, tag = 'scoped memory for tpu_custom_call.1']
    %9 = vsyncpa [#allocation5], 0
    // Predicated region
    $region2: #{tpu_custom_call.1} parent=1 // pred_check
      _
    $region3: #{tpu_custom_call.1} parent=1 // pred_check_branch
      %11 = sbr.rel (0) target = $region5
    $region4: #{tpu_custom_call.1} parent=1 // pred_region
      // Predicated region
      $region6: #{tpu_custom_call.1} parent=4 // pred_check
        _
      $region7: #{tpu_custom_call.1} parent=4 // pred_check_branch
        %13 = sbr.rel (0) target = $region9
      $region8: #{tpu_custom_call.1} parent=4 // pred_region
        // Predicated region
        $region10: #{tpu_custom_call.1} parent=8 // pred_check
          _
        $region11: #{tpu_custom_call.1} parent=8 // pred_check_branch
          %15 = sbr.rel target = $region13
        $region12: #{tpu_custom_call.1} parent=8 // pred_region
          // Predicated region
          $region25: #{tpu_custom_call.1} parent=12 // pred_check
            _
          $region26: #{tpu_custom_call.1} parent=12 // pred_check_branch
            %33 = sbr.rel (0) target = $region28
          $region27: #{tpu_custom_call.1} parent=12 // pred_region
            loop: start=0, step=1, limit=1
            $region29: #{tpu_custom_call.1} parent=27 // loop_pre_header
              _
            $region30: #{tpu_custom_call.1} parent=27 // loop_header
              %s35 = sphi 0, %s39
              %p36 = scmp.ge.s32.totalorder %s35, 1
              %s40 = sphi %s0, %s0
              %s41 = sphi [#allocation2], [#allocation2]
            $region31: #{tpu_custom_call.1} parent=27 // loop_header_branch
              %38 = sbr.rel (%p36) target = $region35
            $region32: #{tpu_custom_call.1} parent=27 // loop_body
              _
            $region33: #{tpu_custom_call.1} parent=27 // loop_footer
              %s39 = sadd.s32 1, %s35
            $region34: #{tpu_custom_call.1} parent=27 // loop_footer_branch
              %34 = sbr.rel target = $region30
            $region35: #{tpu_custom_call.1} parent=27 // loop_exit
              _
            %s43 = ssub.s32 16, 1
            loop: start=0, step=1, limit=1
            $region36: #{tpu_custom_call.1} parent=27 // loop_pre_header
              _
            $region37: #{tpu_custom_call.1} parent=27 // loop_header
              %s45 = sphi 0, %s49
              %p46 = scmp.ge.s32.totalorder %s45, 1
              %s50 = sphi %s0, %s0
              %s51 = sphi [#allocation2], [#allocation2]
            $region38: #{tpu_custom_call.1} parent=27 // loop_header_branch
              %48 = sbr.rel (%p46) target = $region42
            $region39: #{tpu_custom_call.1} parent=27 // loop_body
              %v52 = vld [vmem:[%s50] sm:%s43]
              %53 = vst [vmem:[%s51] sm:%s43] %v52
              %v54 = vld [vmem:[%s50 + $0x8] sm:%s43]
              %55 = vst [vmem:[%s51 + $0x4] sm:%s43] %v54
            $region40: #{tpu_custom_call.1} parent=27 // loop_footer
              %s49 = sadd.s32 1, %s45
            $region41: #{tpu_custom_call.1} parent=27 // loop_footer_branch
              %44 = sbr.rel target = $region37
            $region42: #{tpu_custom_call.1} parent=27 // loop_exit
              _
          $region28: #{tpu_custom_call.1} parent=12 // pred_fallthru
            _
        $region13: #{tpu_custom_call.1} parent=8 // pred_fallthru
          _
        // Predicated region
        $region14: #{tpu_custom_call.1} parent=8 // pred_check
          _
        $region15: #{tpu_custom_call.1} parent=8 // pred_check_branch
          %17 = sbr.rel (0) target = $region17
        $region16: #{tpu_custom_call.1} parent=8 // pred_region
          %s19 = ssub.s32 16, 1
          loop: start=0, step=1, limit=1
          $region18: #{tpu_custom_call.1} parent=16 // loop_pre_header
            _
          $region19: #{tpu_custom_call.1} parent=16 // loop_header
            %s21 = sphi 0, %s25
            %p22 = scmp.ge.s32.totalorder %s21, 1
            %s26 = sphi %s0, %s0
            %s27 = sphi [#allocation2], [#allocation2]
          $region20: #{tpu_custom_call.1} parent=16 // loop_header_branch
            %24 = sbr.rel (%p22) target = $region24
          $region21: #{tpu_custom_call.1} parent=16 // loop_body
            %v28 = vld [vmem:[%s26] sm:%s19]
            %29 = vst [vmem:[%s27] sm:%s19] %v28
            %v30 = vld [vmem:[%s26 + $0x8] sm:%s19]
            %31 = vst [vmem:[%s27 + $0x4] sm:%s19] %v30
          $region22: #{tpu_custom_call.1} parent=16 // loop_footer
            %s25 = sadd.s32 1, %s21
          $region23: #{tpu_custom_call.1} parent=16 // loop_footer_branch
            %20 = sbr.rel target = $region19
          $region24: #{tpu_custom_call.1} parent=16 // loop_exit
            _
        $region17: #{tpu_custom_call.1} parent=8 // pred_fallthru
          _
      $region9: #{tpu_custom_call.1} parent=4 // pred_fallthru
        _
      %56 = vnop
    $region5: #{tpu_custom_call.1} parent=1 // pred_fallthru
      _
    // Predicated region
    $region43: #{tpu_custom_call.1} parent=1 // pred_check
      _
    $region44: #{tpu_custom_call.1} parent=1 // pred_check_branch
      %58 = sbr.rel (0) target = $region46
    $region45: #{tpu_custom_call.1} parent=1 // pred_region
      %s59 = sadd.s32 0, 1
      %s60 = smul.addr %s59, 4
      %s61 = scalar_lea.vmem %s1, %s60
      // Predicated region
      $region47: #{tpu_custom_call.1} parent=45 // pred_check
        _
      $region48: #{tpu_custom_call.1} parent=45 // pred_check_branch
        %63 = sbr.rel (0) target = $region50
      $region49: #{tpu_custom_call.1} parent=45 // pred_region
        // Predicated region
        $region51: #{tpu_custom_call.1} parent=49 // pred_check
          _
        $region52: #{tpu_custom_call.1} parent=49 // pred_check_branch
          %65 = sbr.rel target = $region54
        $region53: #{tpu_custom_call.1} parent=49 // pred_region
          // Predicated region
          $region66: #{tpu_custom_call.1} parent=53 // pred_check
            _
          $region67: #{tpu_custom_call.1} parent=53 // pred_check_branch
            %83 = sbr.rel (0) target = $region69
          $region68: #{tpu_custom_call.1} parent=53 // pred_region
            loop: start=0, step=1, limit=1
            $region70: #{tpu_custom_call.1} parent=68 // loop_pre_header
              _
            $region71: #{tpu_custom_call.1} parent=68 // loop_header
              %s85 = sphi 0, %s89
              %p86 = scmp.ge.s32.totalorder %s85, 1
              %s90 = sphi %s61, %s61
              %s91 = sphi [#allocation3], [#allocation3]
            $region72: #{tpu_custom_call.1} parent=68 // loop_header_branch
              %88 = sbr.rel (%p86) target = $region76
            $region73: #{tpu_custom_call.1} parent=68 // loop_body
              _
            $region74: #{tpu_custom_call.1} parent=68 // loop_footer
              %s89 = sadd.s32 1, %s85
            $region75: #{tpu_custom_call.1} parent=68 // loop_footer_branch
              %84 = sbr.rel target = $region71
            $region76: #{tpu_custom_call.1} parent=68 // loop_exit
              _
            %s93 = ssub.s32 16, 1
            loop: start=0, step=1, limit=1
            $region77: #{tpu_custom_call.1} parent=68 // loop_pre_header
              _
            $region78: #{tpu_custom_call.1} parent=68 // loop_header
              %s95 = sphi 0, %s99
              %p96 = scmp.ge.s32.totalorder %s95, 1
              %s100 = sphi %s61, %s61
              %s101 = sphi [#allocation3], [#allocation3]
            $region79: #{tpu_custom_call.1} parent=68 // loop_header_branch
              %98 = sbr.rel (%p96) target = $region83
            $region80: #{tpu_custom_call.1} parent=68 // loop_body
              %v102 = vld [vmem:[%s100] sm:%s93]
              %103 = vst [vmem:[%s101] sm:%s93] %v102
              %v104 = vld [vmem:[%s100 + $0x8] sm:%s93]
              %105 = vst [vmem:[%s101 + $0x4] sm:%s93] %v104
            $region81: #{tpu_custom_call.1} parent=68 // loop_footer
              %s99 = sadd.s32 1, %s95
            $region82: #{tpu_custom_call.1} parent=68 // loop_footer_branch
              %94 = sbr.rel target = $region78
            $region83: #{tpu_custom_call.1} parent=68 // loop_exit
              _
          $region69: #{tpu_custom_call.1} parent=53 // pred_fallthru
            _
        $region54: #{tpu_custom_call.1} parent=49 // pred_fallthru
          _
        // Predicated region
        $region55: #{tpu_custom_call.1} parent=49 // pred_check
          _
        $region56: #{tpu_custom_call.1} parent=49 // pred_check_branch
          %67 = sbr.rel (0) target = $region58
        $region57: #{tpu_custom_call.1} parent=49 // pred_region
          %s69 = ssub.s32 16, 1
          loop: start=0, step=1, limit=1
          $region59: #{tpu_custom_call.1} parent=57 // loop_pre_header
            _
          $region60: #{tpu_custom_call.1} parent=57 // loop_header
            %s71 = sphi 0, %s75
            %p72 = scmp.ge.s32.totalorder %s71, 1
            %s76 = sphi %s61, %s61
            %s77 = sphi [#allocation3], [#allocation3]
          $region61: #{tpu_custom_call.1} parent=57 // loop_header_branch
            %74 = sbr.rel (%p72) target = $region65
          $region62: #{tpu_custom_call.1} parent=57 // loop_body
            %v78 = vld [vmem:[%s76] sm:%s69]
            %79 = vst [vmem:[%s77] sm:%s69] %v78
            %v80 = vld [vmem:[%s76 + $0x8] sm:%s69]
            %81 = vst [vmem:[%s77 + $0x4] sm:%s69] %v80
          $region63: #{tpu_custom_call.1} parent=57 // loop_footer
            %s75 = sadd.s32 1, %s71
          $region64: #{tpu_custom_call.1} parent=57 // loop_footer_branch
            %70 = sbr.rel target = $region60
          $region65: #{tpu_custom_call.1} parent=57 // loop_exit
            _
        $region58: #{tpu_custom_call.1} parent=49 // pred_fallthru
          _
      $region50: #{tpu_custom_call.1} parent=45 // pred_fallthru
        _
      %106 = vnop
    $region46: #{tpu_custom_call.1} parent=1 // pred_fallthru
      _
    // Predicated region
    $region84: #{tpu_custom_call.1} parent=1 // pred_check
      _
    $region85: #{tpu_custom_call.1} parent=1 // pred_check_branch
      %108 = sbr.rel (0) target = $region87
    $region86: #{tpu_custom_call.1} parent=1 // pred_region
      _
    $region87: #{tpu_custom_call.1} parent=1 // pred_fallthru
      _
    // Predicated region
    $region88: #{tpu_custom_call.1} parent=1 // pred_check
      _
    $region89: #{tpu_custom_call.1} parent=1 // pred_check_branch
      %110 = sbr.rel (0) target = $region91
    $region90: #{tpu_custom_call.1} parent=1 // pred_region
      _
    $region91: #{tpu_custom_call.1} parent=1 // pred_fallthru
      _
    // Predicated region
    $region92: #{tpu_custom_call.1} parent=1 // pred_check
      _
    $region93: #{tpu_custom_call.1} parent=1 // pred_check_branch
      %112 = sbr.rel (0) target = $region95
    $region94: #{tpu_custom_call.1} parent=1 // pred_region
      _
    $region95: #{tpu_custom_call.1} parent=1 // pred_fallthru
      _
    // Predicated region
    $region96: #{tpu_custom_call.1} parent=1 // pred_check
      _
    $region97: #{tpu_custom_call.1} parent=1 // pred_check_branch
      %114 = sbr.rel (0) target = $region99
    $region98: #{tpu_custom_call.1} parent=1 // pred_region
      _
    $region99: #{tpu_custom_call.1} parent=1 // pred_fallthru
      _
    %s115 = sadd.s32 0, 1
    %v116 = vld [vmem:[%s3] sm:$0xff]
    %v117 = vld [vmem:[#allocation2] sm:$0xf]
    %v118 = vld [vmem:[#allocation3] sm:$0xf]
    %v119 = vld [vmem:[%s2] sm:$0xff]
    %s120 = scalar_lea.vmem %s2, 8
    %v121 = vld [vmem:[%s120] sm:$0xff]
    %124 = vrot.lane.b32.xlu0 %v117, 127
    %v125 = vpop.permute.xlu0 %124
    %126 = vrot.lane.b32.xlu0 %v118, 127
    %v127 = vpop.permute.xlu0 %126
    %vm128 = vcmask 1039360
    %v129 = vsel %vm128, %v125, %v127
    %vm130 = vcmask 31744
    %v132 = vsel %vm130, %v121, 0
    %vm134 = vcmask 1043456
    %v135 = vsel %vm134, %v129, 0
    %137 = vmatprep.subr.mxu0 0.0
    %138 = vmatpush1.msra.mxu0 0.0
    %139 = vmatprep.subr.mxu0 0.0
    %140 = vmatpush1.msra.mxu0 0.0
    %141 = vmatprep.subr.mxu0 0.0
    %142 = vmatpush1.msra.mxu0 0.0
    %143 = vmatprep.subr.mxu0 0.0
    %144 = vmatpush1.msra.mxu0 0.0
    %145 = vmatprep.subr.mxu0 0.0
    %146 = vmatpush1.msra.mxu0 0.0
    %147 = vmatprep.subr.mxu0 0.0
    %148 = vmatpush1.msra.mxu0 0.0
    %149 = vmatprep.subr.mxu0 0.0
    %150 = vmatpush1.msra.mxu0 0.0
    %151 = vmatprep.subr.mxu0 0.0
    %152 = vmatpush1.msra.mxu0 0.0
    %153 = vmatprep.subr.mxu0 0.0
    %154 = vmatpush1.msra.mxu0 0.0
    %155 = vmatprep.subr.mxu0 0.0
    %156 = vmatpush1.msra.mxu0 0.0
    %157 = vmatprep.subr.mxu0 0.0
    %158 = vmatpush1.msra.mxu0 0.0
    %159 = vmatprep.subr.mxu0 0.0
    %160 = vmatpush1.msra.mxu0 0.0
    %161 = vmatprep.subr.mxu0 0.0
    %162 = vmatpush1.msra.mxu0 0.0
    %163 = vmatprep.subr.mxu0 0.0
    %164 = vmatpush1.msra.mxu0 0.0
    %165 = vmatprep.subr.mxu0 0.0
    %166 = vmatpush1.msra.mxu0 0.0
    %167 = vmatprep.subr.mxu0 0.0
    %168 = vmatpush1.msra.mxu0 %v135
    %169 = vmatprep.subr.mxu0 0.0
    %170 = vmatpush2.msra.mxu0 0.0
    %171 = vmatprep.subr.mxu0 0.0
    %172 = vmatpush2.msra.mxu0 0.0
    %173 = vmatprep.subr.mxu0 0.0
    %174 = vmatpush2.msra.mxu0 0.0
    %175 = vmatprep.subr.mxu0 0.0
    %176 = vmatpush2.msra.mxu0 0.0
    %177 = vmatprep.subr.mxu0 0.0
    %178 = vmatpush2.msra.mxu0 0.0
    %179 = vmatprep.subr.mxu0 0.0
    %180 = vmatpush2.msra.mxu0 0.0
    %181 = vmatprep.subr.mxu0 0.0
    %182 = vmatpush2.msra.mxu0 0.0
    %183 = vmatprep.subr.mxu0 0.0
    %184 = vmatpush2.msra.mxu0 0.0
    %185 = vmatprep.subr.mxu0 0.0
    %186 = vmatpush2.msra.mxu0 0.0
    %187 = vmatprep.subr.mxu0 0.0
    %188 = vmatpush2.msra.mxu0 0.0
    %189 = vmatprep.subr.mxu0 0.0
    %190 = vmatpush2.msra.mxu0 0.0
    %191 = vmatprep.subr.mxu0 0.0
    %192 = vmatpush2.msra.mxu0 0.0
    %193 = vmatprep.subr.mxu0 0.0
    %194 = vmatpush2.msra.mxu0 0.0
    %195 = vmatprep.subr.mxu0 0.0
    %196 = vmatpush2.msra.mxu0 0.0
    %197 = vmatprep.subr.mxu0 0.0
    %198 = vmatpush2.msra.mxu0 0.0
    %199 = vmatprep.subr.mxu0 0.0
    %200 = vmatpush2.msra.mxu0 0.0
    %201 = vmatprep.mubr.f32.mxu0 0.0
    %202 = vmatmul.mubr.f32.gmra.mxu0 %v132
    %v203 = vpop.f32.mrf.mxu0
    %v204 = vadd.f32 0.0, %v203
    %v205 = vpop.f32.mrf.mxu0
    %206 = vdwg.mxu0
    %v208 = vsel %vm130, %v119, 0
    %v210 = vsel %vm134, %v117, 0
    %212 = vmatprep.subr.mxu0 0.0
    %213 = vmatpush1.msra.mxu0 0.0
    %214 = vmatprep.subr.mxu0 0.0
    %215 = vmatpush1.msra.mxu0 0.0
    %216 = vmatprep.subr.mxu0 0.0
    %217 = vmatpush1.msra.mxu0 0.0
    %218 = vmatprep.subr.mxu0 0.0
    %219 = vmatpush1.msra.mxu0 0.0
    %220 = vmatprep.subr.mxu0 0.0
    %221 = vmatpush1.msra.mxu0 0.0
    %222 = vmatprep.subr.mxu0 0.0
    %223 = vmatpush1.msra.mxu0 0.0
    %224 = vmatprep.subr.mxu0 0.0
    %225 = vmatpush1.msra.mxu0 0.0
    %226 = vmatprep.subr.mxu0 0.0
    %227 = vmatpush1.msra.mxu0 0.0
    %228 = vmatprep.subr.mxu0 0.0
    %229 = vmatpush1.msra.mxu0 0.0
    %230 = vmatprep.subr.mxu0 0.0
    %231 = vmatpush1.msra.mxu0 0.0
    %232 = vmatprep.subr.mxu0 0.0
    %233 = vmatpush1.msra.mxu0 0.0
    %234 = vmatprep.subr.mxu0 0.0
    %235 = vmatpush1.msra.mxu0 0.0
    %236 = vmatprep.subr.mxu0 0.0
    %237 = vmatpush1.msra.mxu0 0.0
    %238 = vmatprep.subr.mxu0 0.0
    %239 = vmatpush1.msra.mxu0 0.0
    %240 = vmatprep.subr.mxu0 0.0
    %241 = vmatpush1.msra.mxu0 0.0
    %242 = vmatprep.subr.mxu0 0.0
    %243 = vmatpush1.msra.mxu0 %v210
    %244 = vmatprep.subr.mxu0 0.0
    %245 = vmatpush2.msra.mxu0 0.0
    %246 = vmatprep.subr.mxu0 0.0
    %247 = vmatpush2.msra.mxu0 0.0
    %248 = vmatprep.subr.mxu0 0.0
    %249 = vmatpush2.msra.mxu0 0.0
    %250 = vmatprep.subr.mxu0 0.0
    %251 = vmatpush2.msra.mxu0 0.0
    %252 = vmatprep.subr.mxu0 0.0
    %253 = vmatpush2.msra.mxu0 0.0
    %254 = vmatprep.subr.mxu0 0.0
    %255 = vmatpush2.msra.mxu0 0.0
    %256 = vmatprep.subr.mxu0 0.0
    %257 = vmatpush2.msra.mxu0 0.0
    %258 = vmatprep.subr.mxu0 0.0
    %259 = vmatpush2.msra.mxu0 0.0
    %260 = vmatprep.subr.mxu0 0.0
    %261 = vmatpush2.msra.mxu0 0.0
    %262 = vmatprep.subr.mxu0 0.0
    %263 = vmatpush2.msra.mxu0 0.0
    %264 = vmatprep.subr.mxu0 0.0
    %265 = vmatpush2.msra.mxu0 0.0
    %266 = vmatprep.subr.mxu0 0.0
    %267 = vmatpush2.msra.mxu0 0.0
    %268 = vmatprep.subr.mxu0 0.0
    %269 = vmatpush2.msra.mxu0 0.0
    %270 = vmatprep.subr.mxu0 0.0
    %271 = vmatpush2.msra.mxu0 0.0
    %272 = vmatprep.subr.mxu0 0.0
    %273 = vmatpush2.msra.mxu0 0.0
    %274 = vmatprep.subr.mxu0 0.0
    %275 = vmatpush2.msra.mxu0 0.0
    %276 = vmatprep.mubr.f32.mxu0 0.0
    %277 = vmatmul.mubr.f32.gmra.mxu0 %v208
    %v278 = vpop.f32.mrf.mxu0
    %v279 = vadd.f32 %v204, %v278
    %v280 = vpop.f32.mrf.mxu0
    %281 = vdwg.mxu0
    %s282 = scalar_lea.vmem %s2, 16
    %v283 = vld [vmem:[%s282] sm:$0xff]
    %284 = vrot.lane.b32.xlu0 %v117, 126
    %v285 = vpop.permute.xlu0 %284
    %286 = vrot.lane.b32.xlu0 %v118, 126
    %v287 = vpop.permute.xlu0 %286
    %vm288 = vcmask 1031168
    %v289 = vsel %vm288, %v285, %v287
    %v291 = vsel %vm130, %v283, 0
    %v293 = vsel %vm134, %v289, 0
    %295 = vmatprep.subr.mxu0 0.0
    %296 = vmatpush1.msra.mxu0 0.0
    %297 = vmatprep.subr.mxu0 0.0
    %298 = vmatpush1.msra.mxu0 0.0
    %299 = vmatprep.subr.mxu0 0.0
    %300 = vmatpush1.msra.mxu0 0.0
    %301 = vmatprep.subr.mxu0 0.0
    %302 = vmatpush1.msra.mxu0 0.0
    %303 = vmatprep.subr.mxu0 0.0
    %304 = vmatpush1.msra.mxu0 0.0
    %305 = vmatprep.subr.mxu0 0.0
    %306 = vmatpush1.msra.mxu0 0.0
    %307 = vmatprep.subr.mxu0 0.0
    %308 = vmatpush1.msra.mxu0 0.0
    %309 = vmatprep.subr.mxu0 0.0
    %310 = vmatpush1.msra.mxu0 0.0
    %311 = vmatprep.subr.mxu0 0.0
    %312 = vmatpush1.msra.mxu0 0.0
    %313 = vmatprep.subr.mxu0 0.0
    %314 = vmatpush1.msra.mxu0 0.0
    %315 = vmatprep.subr.mxu0 0.0
    %316 = vmatpush1.msra.mxu0 0.0
    %317 = vmatprep.subr.mxu0 0.0
    %318 = vmatpush1.msra.mxu0 0.0
    %319 = vmatprep.subr.mxu0 0.0
    %320 = vmatpush1.msra.mxu0 0.0
    %321 = vmatprep.subr.mxu0 0.0
    %322 = vmatpush1.msra.mxu0 0.0
    %323 = vmatprep.subr.mxu0 0.0
    %324 = vmatpush1.msra.mxu0 0.0
    %325 = vmatprep.subr.mxu0 0.0
    %326 = vmatpush1.msra.mxu0 %v293
    %327 = vmatprep.subr.mxu0 0.0
    %328 = vmatpush2.msra.mxu0 0.0
    %329 = vmatprep.subr.mxu0 0.0
    %330 = vmatpush2.msra.mxu0 0.0
    %331 = vmatprep.subr.mxu0 0.0
    %332 = vmatpush2.msra.mxu0 0.0
    %333 = vmatprep.subr.mxu0 0.0
    %334 = vmatpush2.msra.mxu0 0.0
    %335 = vmatprep.subr.mxu0 0.0
    %336 = vmatpush2.msra.mxu0 0.0
    %337 = vmatprep.subr.mxu0 0.0
    %338 = vmatpush2.msra.mxu0 0.0
    %339 = vmatprep.subr.mxu0 0.0
    %340 = vmatpush2.msra.mxu0 0.0
    %341 = vmatprep.subr.mxu0 0.0
    %342 = vmatpush2.msra.mxu0 0.0
    %343 = vmatprep.subr.mxu0 0.0
    %344 = vmatpush2.msra.mxu0 0.0
    %345 = vmatprep.subr.mxu0 0.0
    %346 = vmatpush2.msra.mxu0 0.0
    %347 = vmatprep.subr.mxu0 0.0
    %348 = vmatpush2.msra.mxu0 0.0
    %349 = vmatprep.subr.mxu0 0.0
    %350 = vmatpush2.msra.mxu0 0.0
    %351 = vmatprep.subr.mxu0 0.0
    %352 = vmatpush2.msra.mxu0 0.0
    %353 = vmatprep.subr.mxu0 0.0
    %354 = vmatpush2.msra.mxu0 0.0
    %355 = vmatprep.subr.mxu0 0.0
    %356 = vmatpush2.msra.mxu0 0.0
    %357 = vmatprep.subr.mxu0 0.0
    %358 = vmatpush2.msra.mxu0 0.0
    %359 = vmatprep.mubr.f32.mxu0 0.0
    %360 = vmatmul.mubr.f32.gmra.mxu0 %v291
    %v361 = vpop.f32.mrf.mxu0
    %v362 = vadd.f32 0.0, %v361
    %v363 = vpop.f32.mrf.mxu0
    %364 = vdwg.mxu0
    %v365 = vadd.f32 %v279, %v362
    %367 = vset.pattern.permute.xlu0 0
    %368 = vperm.xlu0 %367, %v116
    %v369 = vpop.permute.xlu0 %368
    %v371 = vadd.f32 %v365, %v369
    %372 = vst [vmem:[#allocation4] sm:$0xff] %v371
    %s373 = scalar_lea.vmem [#allocation2], 4
    %v374 = vld [vmem:[%s373] sm:$0xf]
    %s375 = scalar_lea.vmem [#allocation3], 4
    %v376 = vld [vmem:[%s375] sm:$0xf]
    %v377 = vld [vmem:[%s2] sm:$0xff]
    %v378 = vld [vmem:[%s120] sm:$0xff]
    %381 = vrot.lane.b32.xlu0 %v374, 127
    %v382 = vpop.permute.xlu0 %381
    %383 = vrot.lane.b32.xlu0 %v376, 127
    %v384 = vpop.permute.xlu0 %383
    %v385 = vsel %vm128, %v382, %v384
    %v387 = vsel %vm130, %v378, 0
    %v389 = vsel %vm134, %v385, 0
    %391 = vmatprep.subr.mxu0 0.0
    %392 = vmatpush1.msra.mxu0 0.0
    %393 = vmatprep.subr.mxu0 0.0
    %394 = vmatpush1.msra.mxu0 0.0
    %395 = vmatprep.subr.mxu0 0.0
    %396 = vmatpush1.msra.mxu0 0.0
    %397 = vmatprep.subr.mxu0 0.0
    %398 = vmatpush1.msra.mxu0 0.0
    %399 = vmatprep.subr.mxu0 0.0
    %400 = vmatpush1.msra.mxu0 0.0
    %401 = vmatprep.subr.mxu0 0.0
    %402 = vmatpush1.msra.mxu0 0.0
    %403 = vmatprep.subr.mxu0 0.0
    %404 = vmatpush1.msra.mxu0 0.0
    %405 = vmatprep.subr.mxu0 0.0
    %406 = vmatpush1.msra.mxu0 0.0
    %407 = vmatprep.subr.mxu0 0.0
    %408 = vmatpush1.msra.mxu0 0.0
    %409 = vmatprep.subr.mxu0 0.0
    %410 = vmatpush1.msra.mxu0 0.0
    %411 = vmatprep.subr.mxu0 0.0
    %412 = vmatpush1.msra.mxu0 0.0
    %413 = vmatprep.subr.mxu0 0.0
    %414 = vmatpush1.msra.mxu0 0.0
    %415 = vmatprep.subr.mxu0 0.0
    %416 = vmatpush1.msra.mxu0 0.0
    %417 = vmatprep.subr.mxu0 0.0
    %418 = vmatpush1.msra.mxu0 0.0
    %419 = vmatprep.subr.mxu0 0.0
    %420 = vmatpush1.msra.mxu0 0.0
    %421 = vmatprep.subr.mxu0 0.0
    %422 = vmatpush1.msra.mxu0 %v389
    %423 = vmatprep.subr.mxu0 0.0
    %424 = vmatpush2.msra.mxu0 0.0
    %425 = vmatprep.subr.mxu0 0.0
    %426 = vmatpush2.msra.mxu0 0.0
    %427 = vmatprep.subr.mxu0 0.0
    %428 = vmatpush2.msra.mxu0 0.0
    %429 = vmatprep.subr.mxu0 0.0
    %430 = vmatpush2.msra.mxu0 0.0
    %431 = vmatprep.subr.mxu0 0.0
    %432 = vmatpush2.msra.mxu0 0.0
    %433 = vmatprep.subr.mxu0 0.0
    %434 = vmatpush2.msra.mxu0 0.0
    %435 = vmatprep.subr.mxu0 0.0
    %436 = vmatpush2.msra.mxu0 0.0
    %437 = vmatprep.subr.mxu0 0.0
    %438 = vmatpush2.msra.mxu0 0.0
    %439 = vmatprep.subr.mxu0 0.0
    %440 = vmatpush2.msra.mxu0 0.0
    %441 = vmatprep.subr.mxu0 0.0
    %442 = vmatpush2.msra.mxu0 0.0
    %443 = vmatprep.subr.mxu0 0.0
    %444 = vmatpush2.msra.mxu0 0.0
    %445 = vmatprep.subr.mxu0 0.0
    %446 = vmatpush2.msra.mxu0 0.0
    %447 = vmatprep.subr.mxu0 0.0
    %448 = vmatpush2.msra.mxu0 0.0
    %449 = vmatprep.subr.mxu0 0.0
    %450 = vmatpush2.msra.mxu0 0.0
    %451 = vmatprep.subr.mxu0 0.0
    %452 = vmatpush2.msra.mxu0 0.0
    %453 = vmatprep.subr.mxu0 0.0
    %454 = vmatpush2.msra.mxu0 0.0
    %455 = vmatprep.mubr.f32.mxu0 0.0
    %456 = vmatmul.mubr.f32.gmra.mxu0 %v387
    %v457 = vpop.f32.mrf.mxu0
    %v458 = vadd.f32 0.0, %v457
    %v459 = vpop.f32.mrf.mxu0
    %460 = vdwg.mxu0
    %v462 = vsel %vm130, %v377, 0
    %v464 = vsel %vm134, %v374, 0
    %466 = vmatprep.subr.mxu0 0.0
    %467 = vmatpush1.msra.mxu0 0.0
    %468 = vmatprep.subr.mxu0 0.0
    %469 = vmatpush1.msra.mxu0 0.0
    %470 = vmatprep.subr.mxu0 0.0
    %471 = vmatpush1.msra.mxu0 0.0
    %472 = vmatprep.subr.mxu0 0.0
    %473 = vmatpush1.msra.mxu0 0.0
    %474 = vmatprep.subr.mxu0 0.0
    %475 = vmatpush1.msra.mxu0 0.0
    %476 = vmatprep.subr.mxu0 0.0
    %477 = vmatpush1.msra.mxu0 0.0
    %478 = vmatprep.subr.mxu0 0.0
    %479 = vmatpush1.msra.mxu0 0.0
    %480 = vmatprep.subr.mxu0 0.0
    %481 = vmatpush1.msra.mxu0 0.0
    %482 = vmatprep.subr.mxu0 0.0
    %483 = vmatpush1.msra.mxu0 0.0
    %484 = vmatprep.subr.mxu0 0.0
    %485 = vmatpush1.msra.mxu0 0.0
    %486 = vmatprep.subr.mxu0 0.0
    %487 = vmatpush1.msra.mxu0 0.0
    %488 = vmatprep.subr.mxu0 0.0
    %489 = vmatpush1.msra.mxu0 0.0
    %490 = vmatprep.subr.mxu0 0.0
    %491 = vmatpush1.msra.mxu0 0.0
    %492 = vmatprep.subr.mxu0 0.0
    %493 = vmatpush1.msra.mxu0 0.0
    %494 = vmatprep.subr.mxu0 0.0
    %495 = vmatpush1.msra.mxu0 0.0
    %496 = vmatprep.subr.mxu0 0.0
    %497 = vmatpush1.msra.mxu0 %v464
    %498 = vmatprep.subr.mxu0 0.0
    %499 = vmatpush2.msra.mxu0 0.0
    %500 = vmatprep.subr.mxu0 0.0
    %501 = vmatpush2.msra.mxu0 0.0
    %502 = vmatprep.subr.mxu0 0.0
    %503 = vmatpush2.msra.mxu0 0.0
    %504 = vmatprep.subr.mxu0 0.0
    %505 = vmatpush2.msra.mxu0 0.0
    %506 = vmatprep.subr.mxu0 0.0
    %507 = vmatpush2.msra.mxu0 0.0
    %508 = vmatprep.subr.mxu0 0.0
    %509 = vmatpush2.msra.mxu0 0.0
    %510 = vmatprep.subr.mxu0 0.0
    %511 = vmatpush2.msra.mxu0 0.0
    %512 = vmatprep.subr.mxu0 0.0
    %513 = vmatpush2.msra.mxu0 0.0
    %514 = vmatprep.subr.mxu0 0.0
    %515 = vmatpush2.msra.mxu0 0.0
    %516 = vmatprep.subr.mxu0 0.0
    %517 = vmatpush2.msra.mxu0 0.0
    %518 = vmatprep.subr.mxu0 0.0
    %519 = vmatpush2.msra.mxu0 0.0
    %520 = vmatprep.subr.mxu0 0.0
    %521 = vmatpush2.msra.mxu0 0.0
    %522 = vmatprep.subr.mxu0 0.0
    %523 = vmatpush2.msra.mxu0 0.0
    %524 = vmatprep.subr.mxu0 0.0
    %525 = vmatpush2.msra.mxu0 0.0
    %526 = vmatprep.subr.mxu0 0.0
    %527 = vmatpush2.msra.mxu0 0.0
    %528 = vmatprep.subr.mxu0 0.0
    %529 = vmatpush2.msra.mxu0 0.0
    %530 = vmatprep.mubr.f32.mxu0 0.0
    %531 = vmatmul.mubr.f32.gmra.mxu0 %v462
    %v532 = vpop.f32.mrf.mxu0
    %v533 = vadd.f32 %v458, %v532
    %v534 = vpop.f32.mrf.mxu0
    %535 = vdwg.mxu0
    %v536 = vld [vmem:[%s282] sm:$0xff]
    %537 = vrot.lane.b32.xlu0 %v374, 126
    %v538 = vpop.permute.xlu0 %537
    %539 = vrot.lane.b32.xlu0 %v376, 126
    %v540 = vpop.permute.xlu0 %539
    %v541 = vsel %vm288, %v538, %v540
    %v543 = vsel %vm130, %v536, 0
    %v545 = vsel %vm134, %v541, 0
    %547 = vmatprep.subr.mxu0 0.0
    %548 = vmatpush1.msra.mxu0 0.0
    %549 = vmatprep.subr.mxu0 0.0
    %550 = vmatpush1.msra.mxu0 0.0
    %551 = vmatprep.subr.mxu0 0.0
    %552 = vmatpush1.msra.mxu0 0.0
    %553 = vmatprep.subr.mxu0 0.0
    %554 = vmatpush1.msra.mxu0 0.0
    %555 = vmatprep.subr.mxu0 0.0
    %556 = vmatpush1.msra.mxu0 0.0
    %557 = vmatprep.subr.mxu0 0.0
    %558 = vmatpush1.msra.mxu0 0.0
    %559 = vmatprep.subr.mxu0 0.0
    %560 = vmatpush1.msra.mxu0 0.0
    %561 = vmatprep.subr.mxu0 0.0
    %562 = vmatpush1.msra.mxu0 0.0
    %563 = vmatprep.subr.mxu0 0.0
    %564 = vmatpush1.msra.mxu0 0.0
    %565 = vmatprep.subr.mxu0 0.0
    %566 = vmatpush1.msra.mxu0 0.0
    %567 = vmatprep.subr.mxu0 0.0
    %568 = vmatpush1.msra.mxu0 0.0
    %569 = vmatprep.subr.mxu0 0.0
    %570 = vmatpush1.msra.mxu0 0.0
    %571 = vmatprep.subr.mxu0 0.0
    %572 = vmatpush1.msra.mxu0 0.0
    %573 = vmatprep.subr.mxu0 0.0
    %574 = vmatpush1.msra.mxu0 0.0
    %575 = vmatprep.subr.mxu0 0.0
    %576 = vmatpush1.msra.mxu0 0.0
    %577 = vmatprep.subr.mxu0 0.0
    %578 = vmatpush1.msra.mxu0 %v545
    %579 = vmatprep.subr.mxu0 0.0
    %580 = vmatpush2.msra.mxu0 0.0
    %581 = vmatprep.subr.mxu0 0.0
    %582 = vmatpush2.msra.mxu0 0.0
    %583 = vmatprep.subr.mxu0 0.0
    %584 = vmatpush2.msra.mxu0 0.0
    %585 = vmatprep.subr.mxu0 0.0
    %586 = vmatpush2.msra.mxu0 0.0
    %587 = vmatprep.subr.mxu0 0.0
    %588 = vmatpush2.msra.mxu0 0.0
    %589 = vmatprep.subr.mxu0 0.0
    %590 = vmatpush2.msra.mxu0 0.0
    %591 = vmatprep.subr.mxu0 0.0
    %592 = vmatpush2.msra.mxu0 0.0
    %593 = vmatprep.subr.mxu0 0.0
    %594 = vmatpush2.msra.mxu0 0.0
    %595 = vmatprep.subr.mxu0 0.0
    %596 = vmatpush2.msra.mxu0 0.0
    %597 = vmatprep.subr.mxu0 0.0
    %598 = vmatpush2.msra.mxu0 0.0
    %599 = vmatprep.subr.mxu0 0.0
    %600 = vmatpush2.msra.mxu0 0.0
    %601 = vmatprep.subr.mxu0 0.0
    %602 = vmatpush2.msra.mxu0 0.0
    %603 = vmatprep.subr.mxu0 0.0
    %604 = vmatpush2.msra.mxu0 0.0
    %605 = vmatprep.subr.mxu0 0.0
    %606 = vmatpush2.msra.mxu0 0.0
    %607 = vmatprep.subr.mxu0 0.0
    %608 = vmatpush2.msra.mxu0 0.0
    %609 = vmatprep.subr.mxu0 0.0
    %610 = vmatpush2.msra.mxu0 0.0
    %611 = vmatprep.mubr.f32.mxu0 0.0
    %612 = vmatmul.mubr.f32.gmra.mxu0 %v543
    %v613 = vpop.f32.mrf.mxu0
    %v614 = vadd.f32 0.0, %v613
    %v615 = vpop.f32.mrf.mxu0
    %616 = vdwg.mxu0
    %v617 = vadd.f32 %v533, %v614
    %v618 = vadd.f32 %v617, %v369
    %s619 = scalar_lea.vmem [#allocation4], 8
    %620 = vst [vmem:[%s619] sm:$0xff] %v618
    // Predicated region
    $region100: #{tpu_custom_call.1} parent=1 // pred_check
      _
    $region101: #{tpu_custom_call.1} parent=1 // pred_check_branch
      %622 = sbr.rel (0) target = $region103
    $region102: #{tpu_custom_call.1} parent=1 // pred_region
      %s624 = ssub.s32 256, 256
      %625 = vsyncadd [#allocation5], %s624
      %s626 = sshll.u32 [#allocation4], 4
      %s627 = int_to_ptr.vmem [resolvable:$true] %s626
      %632 = dma.vmem_to_hbm [thread:$0]  %s627, 256, %s4, [#allocation5], 128, 128, 8
    $region103: #{tpu_custom_call.1} parent=1 // pred_fallthru
      _
    // Predicated region
    $region104: #{tpu_custom_call.1} parent=1 // pred_check
      _
    $region105: #{tpu_custom_call.1} parent=1 // pred_check_branch
      %634 = sbr.rel (0) target = $region107
    $region106: #{tpu_custom_call.1} parent=1 // pred_region
      %635 = dma.done [#allocation5], 256
    $region107: #{tpu_custom_call.1} parent=1 // pred_fallthru
      _
    %636 = vsyncpa [#allocation5], 1

</llo_original>
